<compile_context>
chip_gen: v5e
topology: v5e:2x2
jax: 0.10.0
libtpu: 0.0.40
codegen_flags: <defaults>
</compile_context>

<pallas_src>
import jax
import jax.numpy as jnp
from jax.experimental import pallas as pl
from jax.experimental.pallas import tpu as pltpu

HIDDEN = 100   # logical hidden width (torch.nn.Linear(..., out_features=100))
LANE = 128     # TPU lane width: hidden axis padded to this
SUBLANE = 8    # f32 sublane granularity for the batch axis


def _round_up(x, m):
    return ((x + m - 1) // m) * m


def _hw_config():
    """Return (max_batch_tile, num_tensorcores, vmem_limit_bytes) per TPU generation."""
    try:
        kind = jax.devices()[0].device_kind.lower()
    except Exception:
        kind = ""
    if "v7" in kind or "7x" in kind:
        # v7x: 64 MiB physical VMEM/TC but 2 TCs/chip -> keep >=2 grid steps,
        # cap the scoped VMEM budget below physical.
        return 8192, 2, 48 * 1024 * 1024
    if "v4" in kind or "v5p" in kind:
        # Other megacore (2-TC) parts.
        return 16384, 2, 64 * 1024 * 1024
    # v5e / v6e: 1 TC, 128 MiB physical VMEM.
    return 16384, 1, 64 * 1024 * 1024


def mlp_kernel(x_ref, w1_ref, b1_ref, w2_ref, b2_ref, w3_ref, b3_ref, out_ref):
    compute_dtype = w1_ref.dtype
    # Cast x to the compute dtype inside the kernel (no wrapper pad/cast pass).
    x = x_ref[...].astype(compute_dtype)

    # layer_1: Linear + ReLU  (MXU matmul, f32 accumulate / epilogue)
    h1 = jnp.dot(x, w1_ref[...], preferred_element_type=jnp.float32) + b1_ref[...]
    h1 = jnp.maximum(h1, 0.0).astype(compute_dtype)

    # layer_2: Linear + ReLU
    h2 = jnp.dot(h1, w2_ref[...], preferred_element_type=jnp.float32) + b2_ref[...]
    h2 = jnp.maximum(h2, 0.0).astype(compute_dtype)

    # output_layer: Linear (no activation)
    out = jnp.dot(h2, w3_ref[...], preferred_element_type=jnp.float32) + b3_ref[...]
    out_ref[...] = out.astype(out_ref.dtype)


def pad_params(params, compute_dtype=jnp.bfloat16):
    """PyTorch layout (w: [out,in], b: [out]) -> transposed weights with ONLY the
    hidden axis zero-padded to 128 lanes. Input/output feature axes stay logical.
    Weights are cast to compute_dtype; biases stay f32 (f32 epilogue)."""
    in_dim = params["w1"].shape[1]
    hid = params["w1"].shape[0]
    out_dim = params["w3"].shape[0]
    d_h = _round_up(hid, LANE)

    def pw(w, rows, cols):                       # [out,in] -> [rows, cols]
        wt = jnp.transpose(w)
        return jnp.pad(wt, ((0, rows - wt.shape[0]), (0, cols - wt.shape[1]))
                       ).astype(compute_dtype)

    def pb(b, cols):                             # [out] -> [1, cols] f32
        return jnp.pad(b.reshape(1, -1), ((0, 0), (0, cols - b.shape[-1]))
                       ).astype(jnp.float32)

    return {
        "w1": pw(params["w1"], in_dim, d_h), "b1": pb(params["b1"], d_h),
        "w2": pw(params["w2"], d_h, d_h),    "b2": pb(params["b2"], d_h),
        "w3": pw(params["w3"], d_h, out_dim), "b3": pb(params["b3"], out_dim),
        "dims": (in_dim, out_dim, d_h),
    }


def network_forward(x, padded, *, batch_tile=None):
    """x: [batch, input_dim] float32.  Returns [batch, output_dim] float32."""
    in_dim, out_dim, d_h = padded["dims"]
    batch = x.shape[0]
    assert x.shape[1] == in_dim

    max_tile, n_cores, vmem_limit = _hw_config()

    # Pad the batch only to the 8-row sublane granularity (never to the tile size).
    padded_batch = _round_up(batch, SUBLANE)
    if padded_batch != batch:
        x = jnp.pad(x, ((0, padded_batch - batch), (0, 0)))

    if batch_tile is None:
        # Large tiles amortize the ~0.35 us per-step overhead; >= n_cores grid
        # steps so the "parallel" axis can shard the batch across TensorCores.
        tb = min(max_tile, _round_up(pl.cdiv(padded_batch, n_cores), SUBLANE))
    else:
        tb = _round_up(int(batch_tile), SUBLANE)
    tb = max(SUBLANE, min(tb, padded_batch))

    grid = (pl.cdiv(padded_batch, tb),)

    # Weights/biases stay resident in VMEM across the whole grid.
    resident = lambda shape: pl.BlockSpec(shape, lambda i: (0, 0))

    bytes_accessed = int(
        x.size * x.dtype.itemsize
        + padded_batch * out_dim * 4
        + sum(padded[k].size * padded[k].dtype.itemsize
              for k in ("w1", "b1", "w2", "b2", "w3", "b3")))
    flops = int(2 * padded_batch * (in_dim * d_h + d_h * d_h + d_h * out_dim))

    out = pl.pallas_call(
        mlp_kernel,
        out_shape=jax.ShapeDtypeStruct((padded_batch, out_dim), jnp.float32),
        grid=grid,
        in_specs=[
            pl.BlockSpec((tb, in_dim), lambda i: (i, 0)),       # x: streamed over batch
            resident((in_dim, d_h)), resident((1, d_h)),        # w1, b1
            resident((d_h, d_h)), resident((1, d_h)),           # w2, b2
            resident((d_h, out_dim)), resident((1, out_dim)),   # w3, b3
        ],
        out_specs=pl.BlockSpec((tb, out_dim), lambda i: (i, 0)),
        compiler_params=pltpu.CompilerParams(
            dimension_semantics=("parallel",),
            vmem_limit_bytes=vmem_limit,
        ),
        cost_estimate=pl.CostEstimate(
            flops=flops, transcendentals=0, bytes_accessed=bytes_accessed),
    )(x, padded["w1"], padded["b1"], padded["w2"], padded["b2"],
      padded["w3"], padded["b3"])

    if padded_batch != batch:
        out = out[:batch]
    return out


def init_params(key, input_dim, output_dim):
    """PyTorch-style layout and default-ish init: w [out,in], b [out]."""
    ks = jax.random.split(key, 6)
    u = lambda k, shape, fan_in: jax.random.uniform(
        k, shape, jnp.float32, -1.0, 1.0) / jnp.sqrt(jnp.float32(fan_in))
    return {
        "w1": u(ks[0], (HIDDEN, input_dim), input_dim), "b1": u(ks[1], (HIDDEN,), input_dim),
        "w2": u(ks[2], (HIDDEN, HIDDEN), HIDDEN),       "b2": u(ks[3], (HIDDEN,), HIDDEN),
        "w3": u(ks[4], (output_dim, HIDDEN), HIDDEN),   "b3": u(ks[5], (output_dim,), HIDDEN),
    }


def reference_forward(x, p):
    h1 = jnp.maximum(x @ p["w1"].T + p["b1"], 0.0)
    h2 = jnp.maximum(h1 @ p["w2"].T + p["b2"], 0.0)
    return h2 @ p["w3"].T + p["b3"]


if __name__ == "__main__":
    key = jax.random.PRNGKey(0)
    k_params, k_x, k_x2, k_x3 = jax.random.split(key, 4)

    batch, input_dim, output_dim = 8, 4, 4  # small, consistent with the coursework agent
    params = init_params(k_params, input_dim, output_dim)
    x = jax.random.normal(k_x, (batch, input_dim), dtype=jnp.float32)
    ref = reference_forward(x, params)

    # Exact-f32 path: must match the reference tightly.
    padded_f32 = pad_params(params, compute_dtype=jnp.float32)
    out_f32 = jax.block_until_ready(network_forward(x, padded_f32))
    assert out_f32.shape == (batch, output_dim)
    assert jnp.allclose(out_f32, ref, atol=1e-4, rtol=1e-4)

    # Performance default: bf16 MXU inputs, f32 accumulation / epilogue.
    padded_bf16 = pad_params(params, compute_dtype=jnp.bfloat16)
    out_bf16 = jax.block_until_ready(network_forward(x, padded_bf16))
    assert out_bf16.shape == (batch, output_dim)
    assert jnp.allclose(out_bf16, ref, atol=5e-2, rtol=5e-2)

    # Multi-step grid path (grid = 2, explicit batch_tile).
    x2 = jax.random.normal(k_x2, (64, input_dim), dtype=jnp.float32)
    out2 = jax.block_until_ready(network_forward(x2, padded_f32, batch_tile=32))
    assert out2.shape == (64, output_dim)
    assert jnp.allclose(out2, reference_forward(x2, params), atol=1e-4, rtol=1e-4)

    # Non-multiple-of-8 batch path (sublane pad + output slice).
    x3 = jax.random.normal(k_x3, (50, input_dim), dtype=jnp.float32)
    out3 = jax.block_until_ready(network_forward(x3, padded_f32))
    assert out3.shape == (50, output_dim)
    assert jnp.allclose(out3, reference_forward(x3, params), atol=1e-4, rtol=1e-4)

    print("KERNEL_OK")
</pallas_src>

<mosaic_0001>
module attributes {stable_mosaic.version = 11 : i64} {
  func.func @mlp_kernel(%arg0: i32, %arg1: memref<8x4xf32, #tpu.memory_space<vmem>>, %arg2: memref<4x128xf32, #tpu.memory_space<vmem>>, %arg3: memref<1x128xf32, #tpu.memory_space<vmem>>, %arg4: memref<128x128xf32, #tpu.memory_space<vmem>>, %arg5: memref<1x128xf32, #tpu.memory_space<vmem>>, %arg6: memref<128x4xf32, #tpu.memory_space<vmem>>, %arg7: memref<1x4xf32, #tpu.memory_space<vmem>>, %arg8: memref<8x4xf32, #tpu.memory_space<vmem>>) attributes {dimension_semantics = [#tpu.dimension_semantics<parallel>], iteration_bounds = array<i64: 1>, scalar_prefetch = 0 : i64, scratch_operands = 0 : i64, tpu.core_type = #tpu.core_type<tc>, window_params = [{transform_indices = @transform_0, window_bounds = array<i64: 8, 4>}, {pipeline_mode = #tpu.pipeline_mode<synchronous>, transform_indices = @transform_1, window_bounds = array<i64: 4, 128>}, {pipeline_mode = #tpu.pipeline_mode<synchronous>, transform_indices = @transform_2, window_bounds = array<i64: 1, 128>}, {pipeline_mode = #tpu.pipeline_mode<synchronous>, transform_indices = @transform_3, window_bounds = array<i64: 128, 128>}, {pipeline_mode = #tpu.pipeline_mode<synchronous>, transform_indices = @transform_4, window_bounds = array<i64: 1, 128>}, {pipeline_mode = #tpu.pipeline_mode<synchronous>, transform_indices = @transform_5, window_bounds = array<i64: 128, 4>}, {pipeline_mode = #tpu.pipeline_mode<synchronous>, transform_indices = @transform_6, window_bounds = array<i64: 1, 4>}, {transform_indices = @transform_7, window_bounds = array<i64: 8, 4>}]} {
    %c0 = arith.constant 0 : index
    %c0_0 = arith.constant 0 : index
    %0 = vector.load %arg1[%c0, %c0_0] : memref<8x4xf32, #tpu.memory_space<vmem>>, vector<8x4xf32>
    %c0_1 = arith.constant 0 : index
    %c0_2 = arith.constant 0 : index
    %1 = vector.load %arg2[%c0_1, %c0_2] : memref<4x128xf32, #tpu.memory_space<vmem>>, vector<4x128xf32>
    %cst = arith.constant dense<0.000000e+00> : vector<8x128xf32>
    %2 = tpu.matmul %0, %1, %cst {dimension_numbers = #tpu.dot_dimension_numbers<[1], [0], [0], [1], [0, 0, 1, 1], [], []>} : vector<8x4xf32>, vector<4x128xf32>, vector<8x128xf32> -> vector<8x128xf32>
    %c0_3 = arith.constant 0 : index
    %c0_4 = arith.constant 0 : index
    %3 = vector.load %arg3[%c0_3, %c0_4] : memref<1x128xf32, #tpu.memory_space<vmem>>, vector<1x128xf32>
    %4 = vector.broadcast %3 : vector<1x128xf32> to vector<8x128xf32>
    %5 = arith.addf %2, %4 : vector<8x128xf32>
    %cst_5 = arith.constant 0.000000e+00 : f32
    %6 = vector.broadcast %cst_5 : f32 to vector<8x128xf32>
    %7 = arith.maximumf %5, %6 : vector<8x128xf32>
    %c0_6 = arith.constant 0 : index
    %c0_7 = arith.constant 0 : index
    %8 = vector.load %arg4[%c0_6, %c0_7] : memref<128x128xf32, #tpu.memory_space<vmem>>, vector<128x128xf32>
    %cst_8 = arith.constant dense<0.000000e+00> : vector<8x128xf32>
    %9 = tpu.matmul %7, %8, %cst_8 {dimension_numbers = #tpu.dot_dimension_numbers<[1], [0], [0], [1], [0, 0, 1, 1], [], []>} : vector<8x128xf32>, vector<128x128xf32>, vector<8x128xf32> -> vector<8x128xf32>
    %c0_9 = arith.constant 0 : index
    %c0_10 = arith.constant 0 : index
    %10 = vector.load %arg5[%c0_9, %c0_10] : memref<1x128xf32, #tpu.memory_space<vmem>>, vector<1x128xf32>
    %11 = vector.broadcast %10 : vector<1x128xf32> to vector<8x128xf32>
    %12 = arith.addf %9, %11 : vector<8x128xf32>
    %cst_11 = arith.constant 0.000000e+00 : f32
    %13 = vector.broadcast %cst_11 : f32 to vector<8x128xf32>
    %14 = arith.maximumf %12, %13 : vector<8x128xf32>
    %c0_12 = arith.constant 0 : index
    %c0_13 = arith.constant 0 : index
    %15 = vector.load %arg6[%c0_12, %c0_13] : memref<128x4xf32, #tpu.memory_space<vmem>>, vector<128x4xf32>
    %cst_14 = arith.constant dense<0.000000e+00> : vector<8x4xf32>
    %16 = tpu.matmul %14, %15, %cst_14 {dimension_numbers = #tpu.dot_dimension_numbers<[1], [0], [0], [1], [0, 0, 1, 1], [], []>} : vector<8x128xf32>, vector<128x4xf32>, vector<8x4xf32> -> vector<8x4xf32>
    %c0_15 = arith.constant 0 : index
    %c0_16 = arith.constant 0 : index
    %17 = vector.load %arg7[%c0_15, %c0_16] : memref<1x4xf32, #tpu.memory_space<vmem>>, vector<1x4xf32>
    %18 = vector.broadcast %17 : vector<1x4xf32> to vector<8x4xf32>
    %19 = arith.addf %16, %18 : vector<8x4xf32>
    %c0_17 = arith.constant 0 : index
    %c0_18 = arith.constant 0 : index
    %20 = vector.load %arg8[%c0_17, %c0_18] : memref<8x4xf32, #tpu.memory_space<vmem>>, vector<8x4xf32>
    tpu.vector_store %arg8[%c0_17, %c0_18], %19 {strides = array<i32>} : memref<8x4xf32, #tpu.memory_space<vmem>>, vector<8x4xf32>,
    return
  }
  func.func @transform_0(%arg0: i32) -> (i32, i32) {
    %c0_i32 = arith.constant 0 : i32
    %c0_i32_0 = arith.constant 0 : i32
    return %arg0, %c0_i32 : i32, i32
  }
  func.func @transform_1(%arg0: i32) -> (i32, i32) {
    %c0_i32 = arith.constant 0 : i32
    %c0_i32_0 = arith.constant 0 : i32
    %c0_i32_1 = arith.constant 0 : i32
    return %c0_i32, %c0_i32_0 : i32, i32
  }
  func.func @transform_2(%arg0: i32) -> (i32, i32) {
    %c0_i32 = arith.constant 0 : i32
    %c0_i32_0 = arith.constant 0 : i32
    %c0_i32_1 = arith.constant 0 : i32
    return %c0_i32, %c0_i32_0 : i32, i32
  }
  func.func @transform_3(%arg0: i32) -> (i32, i32) {
    %c0_i32 = arith.constant 0 : i32
    %c0_i32_0 = arith.constant 0 : i32
    %c0_i32_1 = arith.constant 0 : i32
    return %c0_i32, %c0_i32_0 : i32, i32
  }
  func.func @transform_4(%arg0: i32) -> (i32, i32) {
    %c0_i32 = arith.constant 0 : i32
    %c0_i32_0 = arith.constant 0 : i32
    %c0_i32_1 = arith.constant 0 : i32
    return %c0_i32, %c0_i32_0 : i32, i32
  }
  func.func @transform_5(%arg0: i32) -> (i32, i32) {
    %c0_i32 = arith.constant 0 : i32
    %c0_i32_0 = arith.constant 0 : i32
    %c0_i32_1 = arith.constant 0 : i32
    return %c0_i32, %c0_i32_0 : i32, i32
  }
  func.func @transform_6(%arg0: i32) -> (i32, i32) {
    %c0_i32 = arith.constant 0 : i32
    %c0_i32_0 = arith.constant 0 : i32
    %c0_i32_1 = arith.constant 0 : i32
    return %c0_i32, %c0_i32_0 : i32, i32
  }
  func.func @transform_7(%arg0: i32) -> (i32, i32) {
    %c0_i32 = arith.constant 0 : i32
    %c0_i32_0 = arith.constant 0 : i32
    return %arg0, %c0_i32 : i32, i32
  }
}

</mosaic_0001>

<llo_original>
// kernel: tpu_custom_call.1
$region0: #{tpu_custom_call.1}
  #allocation0 [shape = 'u32[]', space=smem, size = 0x4, offset = 0x4, fixed_abs, tag = 'smem constant byte address 0x4 - core index']
  #allocation1 [shape = 'u32[72,128]{1,0:T(1,128)}', space=vmem, size = 0x9000, scoped, tag = 'internal scratch']
  %s0 = inlined_call_operand.vmem [shape: f32[8,4], index: 0, kind: input, shape index: {}]
  %s1 = inlined_call_operand.vmem [shape: f32[4,128], index: 1, kind: input, shape index: {}]
  %s2 = inlined_call_operand.vmem [shape: f32[1,128], index: 2, kind: input, shape index: {}]
  %s3 = inlined_call_operand.vmem [shape: f32[128,128], index: 3, kind: input, shape index: {}]
  %s4 = inlined_call_operand.vmem [shape: f32[1,128], index: 4, kind: input, shape index: {}]
  %s5 = inlined_call_operand.vmem [shape: f32[128,4], index: 5, kind: input, shape index: {}]
  %s6 = inlined_call_operand.vmem [shape: f32[1,4], index: 6, kind: input, shape index: {}]
  %s7 = inlined_call_operand.vmem [shape: f32[8,4], index: 7, kind: output, shape index: {}]
  %s8 = sld [smem:[#allocation0]]
  $region38: #{tpu_custom_call.1} parent=0
    _
  %s10 = ssub.s32 1, %s8
  %s11 = scalar_select 0, %s10, %s8
  // Predicated region
  $region2: #{tpu_custom_call.1} parent=0 // pred_check
    _
  $region3: #{tpu_custom_call.1} parent=0 // pred_check_branch
    %13 = sbr.rel (0) target = $region5
  $region4: #{tpu_custom_call.1} parent=0 // pred_region
    _
  $region5: #{tpu_custom_call.1} parent=0 // pred_fallthru
    _
  // Predicated region
  $region6: #{tpu_custom_call.1} parent=0 // pred_check
    _
  $region7: #{tpu_custom_call.1} parent=0 // pred_check_branch
    %15 = sbr.rel (0) target = $region9
  $region8: #{tpu_custom_call.1} parent=0 // pred_region
    _
  $region9: #{tpu_custom_call.1} parent=0 // pred_fallthru
    _
  // Predicated region
  $region10: #{tpu_custom_call.1} parent=0 // pred_check
    _
  $region11: #{tpu_custom_call.1} parent=0 // pred_check_branch
    %17 = sbr.rel (0) target = $region13
  $region12: #{tpu_custom_call.1} parent=0 // pred_region
    _
  $region13: #{tpu_custom_call.1} parent=0 // pred_fallthru
    _
  // Predicated region
  $region14: #{tpu_custom_call.1} parent=0 // pred_check
    _
  $region15: #{tpu_custom_call.1} parent=0 // pred_check_branch
    %19 = sbr.rel (0) target = $region17
  $region16: #{tpu_custom_call.1} parent=0 // pred_region
    _
  $region17: #{tpu_custom_call.1} parent=0 // pred_fallthru
    _
  // Predicated region
  $region18: #{tpu_custom_call.1} parent=0 // pred_check
    _
  $region19: #{tpu_custom_call.1} parent=0 // pred_check_branch
    %21 = sbr.rel (0) target = $region21
  $region20: #{tpu_custom_call.1} parent=0 // pred_region
    _
  $region21: #{tpu_custom_call.1} parent=0 // pred_fallthru
    _
  // Predicated region
  $region22: #{tpu_custom_call.1} parent=0 // pred_check
    _
  $region23: #{tpu_custom_call.1} parent=0 // pred_check_branch
    %23 = sbr.rel (0) target = $region25
  $region24: #{tpu_custom_call.1} parent=0 // pred_region
    _
  $region25: #{tpu_custom_call.1} parent=0 // pred_fallthru
    _
  // Predicated region
  $region26: #{tpu_custom_call.1} parent=0 // pred_check
    _
  $region27: #{tpu_custom_call.1} parent=0 // pred_check_branch
    %25 = sbr.rel (0) target = $region29
  $region28: #{tpu_custom_call.1} parent=0 // pred_region
    _
  $region29: #{tpu_custom_call.1} parent=0 // pred_fallthru
    _
  %v26 = vld [vmem:[%s0] sm:$0xff]
  %v27 = vld [vmem:[%s1] sm:$0xf]
  %v28 = vld [vmem:[%s2] sm:$0x1]
  %v30 = vperm.slane %v28, 0
  %vm32 = vcmask 31744
  %v34 = vsel %vm32, %v26, 0
  %vm36 = vcmask 1043456
  %v38 = vsel %vm36, %v27, 0
  %40 = vmatpush.msra.mxu0 0.0
  %41 = vmatpush.msra.mxu0 0.0
  %42 = vmatpush.msra.mxu0 0.0
  %43 = vmatpush.msra.mxu0 0.0
  %44 = vmatpush.msra.mxu0 0.0
  %45 = vmatpush.msra.mxu0 0.0
  %46 = vmatpush.msra.mxu0 0.0
  %47 = vmatpush.msra.mxu0 0.0
  %48 = vmatpush.msra.mxu0 0.0
  %49 = vmatpush.msra.mxu0 0.0
  %50 = vmatpush.msra.mxu0 0.0
  %51 = vmatpush.msra.mxu0 0.0
  %52 = vmatpush.msra.mxu0 0.0
  %53 = vmatpush.msra.mxu0 0.0
  %54 = vmatpush.msra.mxu0 0.0
  %55 = vmatpush.msra.mxu0 %v38
  %56 = vmatmul.f32.gmra.mxu0 %v34
  %v57 = vpop.f32.mrf.mxu0
  %v58 = vadd.f32 %v30, %v57
  %59 = vdwg.mxu0
  %v60 = vmax.f32 %v58, 0.0
  %v61 = vld [vmem:[%s3] sm:$0xff]
  %v62 = vld [vmem:[%s3 + $0x8] sm:$0xff]
  %v63 = vld [vmem:[%s3 + $0x10] sm:$0xff]
  %v64 = vld [vmem:[%s3 + $0x18] sm:$0xff]
  %v65 = vld [vmem:[%s3 + $0x20] sm:$0xff]
  %v66 = vld [vmem:[%s3 + $0x28] sm:$0xff]
  %v67 = vld [vmem:[%s3 + $0x30] sm:$0xff]
  %v68 = vld [vmem:[%s3 + $0x38] sm:$0xff]
  %v69 = vld [vmem:[%s3 + $0x40] sm:$0xff]
  %v70 = vld [vmem:[%s3 + $0x48] sm:$0xff]
  %v71 = vld [vmem:[%s3 + $0x50] sm:$0xff]
  %v72 = vld [vmem:[%s3 + $0x58] sm:$0xff]
  %v73 = vld [vmem:[%s3 + $0x60] sm:$0xff]
  %v74 = vld [vmem:[%s3 + $0x68] sm:$0xff]
  %v75 = vld [vmem:[%s3 + $0x70] sm:$0xff]
  %v76 = vld [vmem:[%s3 + $0x78] sm:$0xff]
  %v77 = vld [vmem:[%s4] sm:$0x1]
  %v79 = vperm.slane %v77, 0
  %81 = vmatpush.msra.mxu0 %v76
  %82 = vmatpush.msra.mxu0 %v75
  %83 = vmatpush.msra.mxu0 %v74
  %84 = vmatpush.msra.mxu0 %v73
  %85 = vmatpush.msra.mxu0 %v72
  %86 = vmatpush.msra.mxu0 %v71
  %87 = vmatpush.msra.mxu0 %v70
  %88 = vmatpush.msra.mxu0 %v69
  %89 = vmatpush.msra.mxu0 %v68
  %90 = vmatpush.msra.mxu0 %v67
  %91 = vmatpush.msra.mxu0 %v66
  %92 = vmatpush.msra.mxu0 %v65
  %93 = vmatpush.msra.mxu0 %v64
  %94 = vmatpush.msra.mxu0 %v63
  %95 = vmatpush.msra.mxu0 %v62
  %96 = vmatpush.msra.mxu0 %v61
  %97 = vmatmul.f32.gmra.mxu0 %v60
  %v98 = vpop.f32.mrf.mxu0
  %v99 = vadd.f32 %v79, %v98
  %100 = vdwg.mxu0
  %v101 = vmax.f32 %v99, 0.0
  %v102 = vld [vmem:[%s5] sm:$0xff]
  %v103 = vld [vmem:[%s5 + $0x8] sm:$0xff]
  %v104 = vld [vmem:[%s5 + $0x10] sm:$0xff]
  %v105 = vld [vmem:[%s5 + $0x18] sm:$0xff]
  %v106 = vld [vmem:[%s5 + $0x20] sm:$0xff]
  %v107 = vld [vmem:[%s5 + $0x28] sm:$0xff]
  %v108 = vld [vmem:[%s5 + $0x30] sm:$0xff]
  %v109 = vld [vmem:[%s5 + $0x38] sm:$0xff]
  %v110 = vld [vmem:[%s5 + $0x40] sm:$0xff]
  %v111 = vld [vmem:[%s5 + $0x48] sm:$0xff]
  %v112 = vld [vmem:[%s5 + $0x50] sm:$0xff]
  %v113 = vld [vmem:[%s5 + $0x58] sm:$0xff]
  %v114 = vld [vmem:[%s5 + $0x60] sm:$0xff]
  %v115 = vld [vmem:[%s5 + $0x68] sm:$0xff]
  %v116 = vld [vmem:[%s5 + $0x70] sm:$0xff]
  %v117 = vld [vmem:[%s5 + $0x78] sm:$0xff]
  %v118 = vld [vmem:[%s6] sm:$0x1]
  %v120 = vperm.slane %v118, 0
  %122 = vmatpush.msra.mxu0 %v117
  %123 = vmatpush.msra.mxu0 %v116
  %124 = vmatpush.msra.mxu0 %v115
  %125 = vmatpush.msra.mxu0 %v114
  %126 = vmatpush.msra.mxu0 %v113
  %127 = vmatpush.msra.mxu0 %v112
  %128 = vmatpush.msra.mxu0 %v111
  %129 = vmatpush.msra.mxu0 %v110
  %130 = vmatpush.msra.mxu0 %v109
  %131 = vmatpush.msra.mxu0 %v108
  %132 = vmatpush.msra.mxu0 %v107
  %133 = vmatpush.msra.mxu0 %v106
  %134 = vmatpush.msra.mxu0 %v105
  %135 = vmatpush.msra.mxu0 %v104
  %136 = vmatpush.msra.mxu0 %v103
  %137 = vmatpush.msra.mxu0 %v102
  %138 = vmatmul.f32.gmra.mxu0 %v101
  %v139 = vpop.f32.mrf.mxu0
  %v140 = vadd.f32 %v120, %v139
  %141 = vdwg.mxu0
  %142 = vst.msk [vmem:[%s7] sm:$0xff] %vm32, %v140
  // Predicated region
  $region30: #{tpu_custom_call.1} parent=0 // pred_check
    _
  $region31: #{tpu_custom_call.1} parent=0 // pred_check_branch
    %144 = sbr.rel (0) target = $region33
  $region32: #{tpu_custom_call.1} parent=0 // pred_region
    _
  $region33: #{tpu_custom_call.1} parent=0 // pred_fallthru
    _
  // Predicated region
  $region34: #{tpu_custom_call.1} parent=0 // pred_check
    _
  $region35: #{tpu_custom_call.1} parent=0 // pred_check_branch
    %146 = sbr.rel (0) target = $region37
  $region36: #{tpu_custom_call.1} parent=0 // pred_region
    _
  $region37: #{tpu_custom_call.1} parent=0 // pred_fallthru
    _

</llo_original>
